<compile_context>
chip_gen: v6e
topology: v6e:2x2x1
jax: 0.10.0
libtpu: 0.0.40
codegen_flags: <defaults>
</compile_context>

<pallas_src>
import jax
import jax.numpy as jnp
from jax.experimental import pallas as pl
from jax.experimental.pallas import tpu as pltpu


def _round_up(x: int, m: int) -> int:
    return (x + m - 1) // m * m


def _conv_bn_hswish_kernel(p_ref, w_ref, s_ref, b_ref, o_ref):
    """One (image, lane-tile) step of the fused im2col-GEMM conv+BN+hardswish.

    p_ref: (1, Kp, TM)  im2col patches (VMEM, pipelined)
    w_ref: (C2, Kp)     conv weight, (kh,kw,c1)-flattened   (VMEM, resident)
    s_ref: (C2, 1)      BN scale  gamma / sqrt(var + eps)   (fp32, resident)
    b_ref: (C2, 1)      BN bias   beta - mean * scale       (fp32, resident)
    o_ref: (1, C2, TM)  activations
    """
    # Convolution as a GEMM on the MXU, accumulated in fp32.
    acc = jnp.dot(w_ref[...], p_ref[0], preferred_element_type=jnp.float32)  # (C2, TM)
    # BatchNorm (inference): per-output-channel affine, broadcast along lanes.
    y = acc * s_ref[...] + b_ref[...]
    # Hardswish: y * relu6(y + 3) / 6  (pure VPU; rides along with the stores).
    y = y * jnp.clip(y + 3.0, 0.0, 6.0) * (1.0 / 6.0)
    o_ref[0] = y.astype(o_ref.dtype)


def conv_bn_hswish_forward(x, weight, gamma, beta, running_mean, running_var,
                           *, stride: int, eps: float = 1e-5,
                           lane_tile: int = 2048):
    """Fused forward of Conv2d(3x3, stride, pad=1, no bias) + BN + Hardswish.

    x:      (N, C1, H, W)   NCHW
    weight: (C2, C1, 3, 3)  OIHW
    gamma, beta, running_mean, running_var: (C2,)
    """
    N, C1, H, W = x.shape
    C2 = weight.shape[0]
    s = stride
    Ho = (H + 2 - 3) // s + 1
    Wo = (W + 2 - 3) // s + 1
    M = Ho * Wo
    K = 9 * C1

    # -------- im2col in the wrapper: layout plumbing only (no arithmetic) ----
    xp = jnp.pad(x, ((0, 0), (0, 0), (1, 1), (1, 1)))
    taps = []
    for kh in range(3):
        for kw in range(3):
            taps.append(xp[:, :, kh:kh + s * Ho:s, kw:kw + s * Wo:s])
    # feature order = (kh, kw, c1)  -> k = (kh*3 + kw)*C1 + c1
    patches = jnp.concatenate(taps, axis=1).reshape(N, K, M)

    # Matching weight layout: (C2, K) with the same (kh, kw, c1) flattening.
    w2 = weight.transpose(0, 2, 3, 1).reshape(C2, K).astype(x.dtype)

    # Fold BN running stats into per-channel scale/bias (kept in fp32).
    scale = (gamma.astype(jnp.float32)
             * jax.lax.rsqrt(running_var.astype(jnp.float32) + eps))
    bias = beta.astype(jnp.float32) - running_mean.astype(jnp.float32) * scale
    scale = scale.reshape(C2, 1)
    bias = bias.reshape(C2, 1)

    # -------- lane-dense tiling --------------------------------------------
    K_pad = _round_up(K, 8)                    # sublane-align GEMM contraction dim
    TM = min(lane_tile, _round_up(M, 128))     # lane tile: multiple of 128
    M_pad = _round_up(M, TM)
    patches = jnp.pad(patches, ((0, 0), (0, K_pad - K), (0, M_pad - M)))
    w2 = jnp.pad(w2, ((0, 0), (0, K_pad - K)))

    num_m = M_pad // TM

    out = pl.pallas_call(
        _conv_bn_hswish_kernel,
        out_shape=jax.ShapeDtypeStruct((N, C2, M_pad), x.dtype),
        grid_spec=pltpu.PrefetchScalarGridSpec(
            num_scalar_prefetch=0,
            grid=(N, num_m),
            in_specs=[
                # pipelined patch tile: (1, K_pad, TM), lane-dense last axis
                pl.BlockSpec((1, K_pad, TM), lambda n, m: (n, 0, m)),
                # weight / BN scale / BN bias: constant block index -> resident
                pl.BlockSpec((C2, K_pad), lambda n, m: (0, 0)),
                pl.BlockSpec((C2, 1), lambda n, m: (0, 0)),
                pl.BlockSpec((C2, 1), lambda n, m: (0, 0)),
            ],
            out_specs=pl.BlockSpec((1, C2, TM), lambda n, m: (n, 0, m)),
        ),
        compiler_params=pltpu.CompilerParams(
            dimension_semantics=("parallel", "parallel")),
    )(patches, w2, scale, bias)

    # Drop lane padding and restore NCHW spatial layout (no transpose needed).
    return out[:, :, :M].reshape(N, C2, Ho, Wo)


class ConvBnHswish:
    """JAX/Pallas port of the PyTorch conv_bn_hswish module (inference BN)."""

    def __init__(self, c1: int, c2: int, stride: int,
                 key: jax.Array | None = None, eps: float = 1e-5):
        if key is None:
            key = jax.random.PRNGKey(0)
        k_w, k_m, k_v, k_g, k_b = jax.random.split(key, 5)
        self.weight = 0.1 * jax.random.normal(k_w, (c2, c1, 3, 3), jnp.float32)
        self.gamma = 0.5 + jax.random.uniform(k_g, (c2,), jnp.float32)
        self.beta = 0.1 * jax.random.normal(k_b, (c2,), jnp.float32)
        self.running_mean = 0.1 * jax.random.normal(k_m, (c2,), jnp.float32)
        self.running_var = 0.5 + jax.random.uniform(k_v, (c2,), jnp.float32)
        self.eps = eps
        self.stride = stride

    def __call__(self, x: jax.Array) -> jax.Array:
        return conv_bn_hswish_forward(
            x, self.weight, self.gamma, self.beta,
            self.running_mean, self.running_var,
            stride=self.stride, eps=self.eps)


if __name__ == "__main__":
    key = jax.random.PRNGKey(0)
    k_mod, k_x = jax.random.split(key)

    N, C1, C2, H, W = 2, 4, 8, 16, 16
    x = jax.random.normal(k_x, (N, C1, H, W), jnp.float32)

    for stride in (1, 2):
        mod = ConvBnHswish(C1, C2, stride, key=k_mod)
        y = jax.block_until_ready(mod(x))

        # Pure-JAX reference: conv (highest precision) + inference BN + hardswish.
        conv = jax.lax.conv_general_dilated(
            x, mod.weight, window_strides=(stride, stride),
            padding=((1, 1), (1, 1)),
            dimension_numbers=("NCHW", "OIHW", "NCHW"),
            precision=jax.lax.Precision.HIGHEST)
        scale = mod.gamma / jnp.sqrt(mod.running_var + mod.eps)
        bias = mod.beta - mod.running_mean * scale
        ref = conv * scale[None, :, None, None] + bias[None, :, None, None]
        ref = ref * jnp.clip(ref + 3.0, 0.0, 6.0) / 6.0

        Ho = (H - 1) // stride + 1
        assert y.shape == (N, C2, Ho, Ho), y.shape
        # The in-kernel matmul runs at default MXU f32 precision; 2e-2 covers
        # that rounding while still catching any im2col/BN/activation bug.
        assert jnp.allclose(y, ref, atol=2e-2, rtol=2e-2), \
            float(jnp.max(jnp.abs(y - ref)))

    print("KERNEL_OK")
</pallas_src>

<mosaic_0001>
module attributes {stable_mosaic.version = 11 : i64} {
  func.func @_conv_bn_hswish_kernel(%arg0: i32, %arg1: i32, %arg2: memref<1x40x256xf32, #tpu.memory_space<vmem>>, %arg3: memref<8x40xf32, #tpu.memory_space<vmem>>, %arg4: memref<8x1xf32, #tpu.memory_space<vmem>>, %arg5: memref<8x1xf32, #tpu.memory_space<vmem>>, %arg6: memref<1x8x256xf32, #tpu.memory_space<vmem>>) attributes {dimension_semantics = [#tpu.dimension_semantics<parallel>, #tpu.dimension_semantics<parallel>], iteration_bounds = array<i64: 2, 1>, scalar_prefetch = 0 : i64, scratch_operands = 0 : i64, tpu.core_type = #tpu.core_type<tc>, window_params = [{transform_indices = @transform_0, window_bounds = array<i64: 1, 40, 256>}, {pipeline_mode = #tpu.pipeline_mode<synchronous>, transform_indices = @transform_1, window_bounds = array<i64: 8, 40>}, {pipeline_mode = #tpu.pipeline_mode<synchronous>, transform_indices = @transform_2, window_bounds = array<i64: 8, 1>}, {pipeline_mode = #tpu.pipeline_mode<synchronous>, transform_indices = @transform_3, window_bounds = array<i64: 8, 1>}, {transform_indices = @transform_4, window_bounds = array<i64: 1, 8, 256>}]} {
    %c0 = arith.constant 0 : index
    %c0_0 = arith.constant 0 : index
    %0 = vector.load %arg3[%c0, %c0_0] : memref<8x40xf32, #tpu.memory_space<vmem>>, vector<8x40xf32>
    %c0_1 = arith.constant 0 : index
    %c0_2 = arith.constant 0 : index
    %c0_3 = arith.constant 0 : index
    %1 = vector.load %arg2[%c0_1, %c0_2, %c0_3] : memref<1x40x256xf32, #tpu.memory_space<vmem>>, vector<1x40x256xf32>
    %2 = vector.shape_cast %1 : vector<1x40x256xf32> to vector<40x256xf32>
    %cst = arith.constant dense<0.000000e+00> : vector<8x256xf32>
    %3 = tpu.matmul %0, %2, %cst {dimension_numbers = #tpu.dot_dimension_numbers<[1], [0], [0], [1], [0, 0, 1, 1], [], []>} : vector<8x40xf32>, vector<40x256xf32>, vector<8x256xf32> -> vector<8x256xf32>
    %c0_4 = arith.constant 0 : index
    %c0_5 = arith.constant 0 : index
    %4 = vector.load %arg4[%c0_4, %c0_5] : memref<8x1xf32, #tpu.memory_space<vmem>>, vector<8x1xf32>
    %5 = vector.broadcast %4 : vector<8x1xf32> to vector<8x256xf32>
    %6 = arith.mulf %3, %5 : vector<8x256xf32>
    %c0_6 = arith.constant 0 : index
    %c0_7 = arith.constant 0 : index
    %7 = vector.load %arg5[%c0_6, %c0_7] : memref<8x1xf32, #tpu.memory_space<vmem>>, vector<8x1xf32>
    %8 = vector.broadcast %7 : vector<8x1xf32> to vector<8x256xf32>
    %9 = arith.addf %6, %8 : vector<8x256xf32>
    %cst_8 = arith.constant 3.000000e+00 : f32
    %10 = vector.broadcast %cst_8 : f32 to vector<8x256xf32>
    %11 = arith.addf %9, %10 : vector<8x256xf32>
    %cst_9 = arith.constant 0.000000e+00 : f32
    %cst_10 = arith.constant 6.000000e+00 : f32
    %12 = vector.broadcast %cst_9 : f32 to vector<8x256xf32>
    %13 = arith.maximumf %12, %11 : vector<8x256xf32>
    %14 = vector.broadcast %cst_10 : f32 to vector<8x256xf32>
    %15 = arith.minimumf %14, %13 : vector<8x256xf32>
    %16 = arith.mulf %9, %15 : vector<8x256xf32>
    %cst_11 = arith.constant 0.166666672 : f32
    %17 = vector.broadcast %cst_11 : f32 to vector<8x256xf32>
    %18 = arith.mulf %16, %17 : vector<8x256xf32>
    %c0_12 = arith.constant 0 : index
    %c0_13 = arith.constant 0 : index
    %c0_14 = arith.constant 0 : index
    %19 = vector.load %arg6[%c0_12, %c0_13, %c0_14] : memref<1x8x256xf32, #tpu.memory_space<vmem>>, vector<1x8x256xf32>
    %20 = vector.shape_cast %19 : vector<1x8x256xf32> to vector<8x256xf32>
    %21 = vector.shape_cast %18 : vector<8x256xf32> to vector<1x8x256xf32>
    tpu.vector_store %arg6[%c0_12, %c0_13, %c0_14], %21 {strides = array<i32>} : memref<1x8x256xf32, #tpu.memory_space<vmem>>, vector<1x8x256xf32>,
    return
  }
  func.func @transform_0(%arg0: i32, %arg1: i32) -> (i32, i32, i32) {
    %c0_i32 = arith.constant 0 : i32
    %c0_i32_0 = arith.constant 0 : i32
    return %arg0, %c0_i32, %arg1 : i32, i32, i32
  }
  func.func @transform_1(%arg0: i32, %arg1: i32) -> (i32, i32) {
    %c0_i32 = arith.constant 0 : i32
    %c0_i32_0 = arith.constant 0 : i32
    %c0_i32_1 = arith.constant 0 : i32
    return %c0_i32, %c0_i32_0 : i32, i32
  }
  func.func @transform_2(%arg0: i32, %arg1: i32) -> (i32, i32) {
    %c0_i32 = arith.constant 0 : i32
    %c0_i32_0 = arith.constant 0 : i32
    %c0_i32_1 = arith.constant 0 : i32
    return %c0_i32, %c0_i32_0 : i32, i32
  }
  func.func @transform_3(%arg0: i32, %arg1: i32) -> (i32, i32) {
    %c0_i32 = arith.constant 0 : i32
    %c0_i32_0 = arith.constant 0 : i32
    %c0_i32_1 = arith.constant 0 : i32
    return %c0_i32, %c0_i32_0 : i32, i32
  }
  func.func @transform_4(%arg0: i32, %arg1: i32) -> (i32, i32, i32) {
    %c0_i32 = arith.constant 0 : i32
    %c0_i32_0 = arith.constant 0 : i32
    return %arg0, %c0_i32, %arg1 : i32, i32, i32
  }
}

</mosaic_0001>

<llo_original>
// kernel: tpu_custom_call.1
$region0: #{tpu_custom_call.1}
  #allocation0 [shape = 'u32[]', space=smem, size = 0x4, offset = 0x4, fixed_abs, tag = 'smem constant byte address 0x4 - core index']
  #allocation1 [shape = 'u32[144,128]{1,0:T(1,128)}', space=vmem, size = 0x12000, scoped, tag = 'internal scratch']
  %s0 = inlined_call_operand.hbm [shape: f32[2,40,256], index: 0, kind: input, shape index: {}]
  %s1 = inlined_call_operand.vmem [shape: f32[8,40], index: 1, kind: input, shape index: {}]
  %s2 = inlined_call_operand.vmem [shape: f32[8,1], index: 2, kind: input, shape index: {}]
  %s3 = inlined_call_operand.vmem [shape: f32[8,1], index: 3, kind: input, shape index: {}]
  %s4 = inlined_call_operand.hbm [shape: f32[2,8,256], index: 4, kind: output, shape index: {}]
  %s5 = sld [smem:[#allocation0]]
  $region53: #{tpu_custom_call.1} parent=0
    _
  %s7 = ssub.s32 1, %s5
  %s8 = scalar_select 0, %s7, %s5
  $region1: #{tpu_custom_call.1} parent=0
    #allocation2 [shape = 'u8[81920]{0}', space=vmem, size = 0x14000, scoped, tag = 'input window, operand 0']
    #allocation3 [shape = 's32[2]{0}', space=sflag, size = 0x8, scoped, tag = 'scoped memory for tpu_custom_call.1']
    #allocation4 [shape = 's32[2]{0}', space=sflag, size = 0x8, scoped, tag = 'scoped memory for tpu_custom_call.1']
    #allocation5 [shape = 'u8[16384]{0}', space=vmem, size = 0x4000, scoped, tag = 'output window, operand 0']
    %9 = vsyncpa [#allocation3], 0
    %s10 = scalar_lea.sflag [#allocation3], 1
    %11 = vsyncpa %s10, 0
    %12 = vsyncpa [#allocation4], 0
    %s13 = scalar_lea.sflag [#allocation4], 1
    %14 = vsyncpa %s13, 0
    loop: start=0, step=1, limit=4
    $region2: #{tpu_custom_call.1} parent=1 // loop_pre_header
      _
    $region3: #{tpu_custom_call.1} parent=1 // loop_header
      %s16 = sphi 0, %s20
      %p17 = scmp.ge.s32.totalorder %s16, 4
      %s23 = sphi 0, %s35
      %s24 = sphi 0, %s31
      %s25 = sphi 0, %s23
      %s26 = sphi 0, %s24
      %s27 = sphi 0, %s25
      %s28 = sphi 0, %s26
      %s40 = sphi 0, %s42
      %s43 = sphi 0, %s40
      %s44 = sphi 0, %s43
      %s60 = sphi 0, %s44
      %s64 = sphi 0, %s64
      %s66 = sphi 0, %s64
      %s67 = sphi 0, %s66
      %s81 = sphi 0, %s67
      %s85 = sphi 0, %s85
      %s87 = sphi 0, %s85
      %s88 = sphi 0, %s87
      %s102 = sphi 0, %s88
      %s106 = sphi 0, %s106
      %s108 = sphi 0, %s106
      %s109 = sphi 0, %s108
      %s123 = sphi 0, %s109
      %s131 = sphi 0, %s133
      %s134 = sphi 0, %s131
      %s135 = sphi 0, %s134
      %s151 = sphi 0, %s135
    $region4: #{tpu_custom_call.1} parent=1 // loop_header_branch
      %19 = sbr.rel (%p17) target = $region8
    $region5: #{tpu_custom_call.1} parent=1 // loop_body
      %s21 = ssub.s32 %s16, 1
      %s22 = ssub.s32 %s16, 2
      %s29 = sadd.s32 1, %s24
      %p30 = scmp.ge.s32.totalorder %s29, 1
      %s31 = scalar_select %p30, 0, %s29
      %s32 = sadd.s32 1, %s23
      %s33 = scalar_select %p30, %s32, %s23
      %p34 = scmp.ge.s32.totalorder %s33, 2
      %s35 = scalar_select %p34, 0, %s33
      %s36 = ssub.s32 %s23, %s35
      %s37 = ssub.s32 %s24, %s31
      %s38 = sor.u32 %s36, %s37
      %p39 = scmp.eq.s32.totalorder %s38, 0
      %s41 = sadd.s32 %s40, 1
      %s42 = scalar_select %p39, %s40, %s41
      %p45 = pneg %p39
      %p46 = scmp.eq.s32.totalorder %s16, 1
      %p47 = por %p45, %p46
      %p48 = scmp.ne.s32.totalorder %s40, %s43
      %p49 = scmp.eq.s32.totalorder %s16, 0
      %p50 = por %p48, %p49
      %p51 = scmp.ne.s32.totalorder %s40, %s43
      %p52 = scmp.eq.s32.totalorder %s21, 1
      %p53 = por %p51, %p52
      %p54 = scmp.ne.s32.totalorder %s43, %s44
      %p55 = scmp.eq.s32.totalorder %s21, 0
      %p56 = por %p54, %p55
      %p57 = scmp.ne.s32.totalorder %s43, %s44
      %p58 = scmp.eq.s32.totalorder %s22, 1
      %p59 = por %p57, %p58
      %p61 = scmp.ne.s32.totalorder %s44, %s60
      %p62 = scmp.eq.s32.totalorder %s22, 0
      %p63 = por %p61, %p62
      %s65 = sadd.s32 %s64, 1
      %p68 = scmp.eq.s32.totalorder %s16, 1
      %p69 = scmp.ne.s32.totalorder %s64, %s66
      %p70 = scmp.eq.s32.totalorder %s16, 0
      %p71 = por %p69, %p70
      %p72 = scmp.ne.s32.totalorder %s64, %s66
      %p73 = scmp.eq.s32.totalorder %s21, 1
      %p74 = por %p72, %p73
      %p75 = scmp.ne.s32.totalorder %s66, %s67
      %p76 = scmp.eq.s32.totalorder %s21, 0
      %p77 = por %p75, %p76
      %p78 = scmp.ne.s32.totalorder %s66, %s67
      %p79 = scmp.eq.s32.totalorder %s22, 1
      %p80 = por %p78, %p79
      %p82 = scmp.ne.s32.totalorder %s67, %s81
      %p83 = scmp.eq.s32.totalorder %s22, 0
      %p84 = por %p82, %p83
      %s86 = sadd.s32 %s85, 1
      %p89 = scmp.eq.s32.totalorder %s16, 1
      %p90 = scmp.ne.s32.totalorder %s85, %s87
      %p91 = scmp.eq.s32.totalorder %s16, 0
      %p92 = por %p90, %p91
      %p93 = scmp.ne.s32.totalorder %s85, %s87
      %p94 = scmp.eq.s32.totalorder %s21, 1
      %p95 = por %p93, %p94
      %p96 = scmp.ne.s32.totalorder %s87, %s88
      %p97 = scmp.eq.s32.totalorder %s21, 0
      %p98 = por %p96, %p97
      %p99 = scmp.ne.s32.totalorder %s87, %s88
      %p100 = scmp.eq.s32.totalorder %s22, 1
      %p101 = por %p99, %p100
      %p103 = scmp.ne.s32.totalorder %s88, %s102
      %p104 = scmp.eq.s32.totalorder %s22, 0
      %p105 = por %p103, %p104
      %s107 = sadd.s32 %s106, 1
      %p110 = scmp.eq.s32.totalorder %s16, 1
      %p111 = scmp.ne.s32.totalorder %s106, %s108
      %p112 = scmp.eq.s32.totalorder %s16, 0
      %p113 = por %p111, %p112
      %p114 = scmp.ne.s32.totalorder %s106, %s108
      %p115 = scmp.eq.s32.totalorder %s21, 1
      %p116 = por %p114, %p115
      %p117 = scmp.ne.s32.totalorder %s108, %s109
      %p118 = scmp.eq.s32.totalorder %s21, 0
      %p119 = por %p117, %p118
      %p120 = scmp.ne.s32.totalorder %s108, %s109
      %p121 = scmp.eq.s32.totalorder %s22, 1
      %p122 = por %p120, %p121
      %p124 = scmp.ne.s32.totalorder %s109, %s123
      %p125 = scmp.eq.s32.totalorder %s22, 0
      %p126 = por %p124, %p125
      %s127 = ssub.s32 %s23, %s35
      %s128 = ssub.s32 %s24, %s31
      %s129 = sor.u32 %s127, %s128
      %p130 = scmp.eq.s32.totalorder %s129, 0
      %s132 = sadd.s32 %s131, 1
      %s133 = scalar_select %p130, %s131, %s132
      %p136 = pneg %p130
      %p137 = scmp.eq.s32.totalorder %s16, 1
      %p138 = por %p136, %p137
      %p139 = scmp.ne.s32.totalorder %s131, %s134
      %p140 = scmp.eq.s32.totalorder %s16, 0
      %p141 = por %p139, %p140
      %p142 = scmp.ne.s32.totalorder %s131, %s134
      %p143 = scmp.eq.s32.totalorder %s21, 1
      %p144 = por %p142, %p143
      %p145 = scmp.ne.s32.totalorder %s134, %s135
      %p146 = scmp.eq.s32.totalorder %s21, 0
      %p147 = por %p145, %p146
      %p148 = scmp.ne.s32.totalorder %s134, %s135
      %p149 = scmp.eq.s32.totalorder %s22, 1
      %p150 = por %p148, %p149
      %p152 = scmp.ne.s32.totalorder %s135, %s151
      %p153 = scmp.eq.s32.totalorder %s22, 0
      %p154 = por %p152, %p153
      %p155 = scmp.le.s32.totalorder 1, %s16
      %p156 = scmp.lt.s32.totalorder %s16, 3
      %p157 = pnand %p155, %p156
      %p158 = pneg %p157
      // Predicated region
      $region9: #{tpu_custom_call.1} parent=5 // pred_check
        _
      $region10: #{tpu_custom_call.1} parent=5 // pred_check_branch
        %160 = sbr.rel (%p157) target = $region12
      $region11: #{tpu_custom_call.1} parent=5 // pred_region
        %s161 = ssub.s32 %s16, 1
        // Predicated region
        $region13: #{tpu_custom_call.1} parent=11 // pred_check
          %p162 = pneg %p77
        $region14: #{tpu_custom_call.1} parent=11 // pred_check_branch
          %164 = sbr.rel (%p162) target = $region16
        $region15: #{tpu_custom_call.1} parent=11 // pred_region
          _
        $region16: #{tpu_custom_call.1} parent=11 // pred_fallthru
          _
        // Predicated region
        $region17: #{tpu_custom_call.1} parent=11 // pred_check
          %p165 = pneg %p98
        $region18: #{tpu_custom_call.1} parent=11 // pred_check_branch
          %167 = sbr.rel (%p165) target = $region20
        $region19: #{tpu_custom_call.1} parent=11 // pred_region
          _
        $region20: #{tpu_custom_call.1} parent=11 // pred_fallthru
          _
        // Predicated region
        $region21: #{tpu_custom_call.1} parent=11 // pred_check
          %p168 = pneg %p119
        $region22: #{tpu_custom_call.1} parent=11 // pred_check_branch
          %170 = sbr.rel (%p168) target = $region24
        $region23: #{tpu_custom_call.1} parent=11 // pred_region
          _
        $region24: #{tpu_custom_call.1} parent=11 // pred_fallthru
          _
      $region12: #{tpu_custom_call.1} parent=5 // pred_fallthru
        _
      %p171 = scmp.lt.s32.totalorder %s16, 2
      // Predicated region
      $region25: #{tpu_custom_call.1} parent=5 // pred_check
        %p172 = pneg %p171
      $region26: #{tpu_custom_call.1} parent=5 // pred_check_branch
        %174 = sbr.rel (%p172) target = $region28
      $region27: #{tpu_custom_call.1} parent=5 // pred_region
        // Predicated region
        $region29: #{tpu_custom_call.1} parent=27 // pred_check
          %p175 = pneg %p50
        $region30: #{tpu_custom_call.1} parent=27 // pred_check_branch
          %177 = sbr.rel (%p175) target = $region32
        $region31: #{tpu_custom_call.1} parent=27 // pred_region
          %s178 = sand.u32 %s40, 1
          %s179 = scalar_lea.sflag [#allocation3], %s178
          %s180 = sand.u32 %s40, 1
          %s181 = smul.addr %s180, 80
          %s182 = scalar_lea.vmem [#allocation2], %s181
          %s183 = smul.u32 2, %s24
          %s185 = ssub.s32 1280, 1280
          %186 = vsyncadd %s179, %s185
          %s187 = smul.addr %s23, 10
          %s188 = sadd.s32 %s183, %s187
          %s189 = smul.addr %s188, 128
          %s190 = scalar_lea.hbm %s0, %s189
          %s191 = sshll.u32 %s182, 4
          %s192 = int_to_ptr.vmem [resolvable:$true] %s191
          %197 = dma.hbm_to_vmem [thread:$0]  %s190, 1280, %s192, %s179, 256, 256, 16
        $region32: #{tpu_custom_call.1} parent=27 // pred_fallthru
          _
      $region28: #{tpu_custom_call.1} parent=5 // pred_fallthru
        _
      %p198 = scmp.le.s32.totalorder 1, %s16
      %p199 = scmp.lt.s32.totalorder %s16, 3
      %p200 = pnand %p198, %p199
      %p201 = pneg %p200
      // Predicated region
      $region33: #{tpu_custom_call.1} parent=5 // pred_check
        _
      $region34: #{tpu_custom_call.1} parent=5 // pred_check_branch
        %203 = sbr.rel (%p200) target = $region36
      $region35: #{tpu_custom_call.1} parent=5 // pred_region
        %s204 = ssub.s32 %s16, 1
        %s205 = sand.u32 %s43, 1
        %s206 = scalar_lea.sflag [#allocation3], %s205
        %s207 = sand.u32 %s43, 1
        %s208 = smul.addr %s207, 80
        %s209 = scalar_lea.vmem [#allocation2], %s208
        // Predicated region
        $region37: #{tpu_custom_call.1} parent=35 // pred_check
          %p210 = pneg %p56
        $region38: #{tpu_custom_call.1} parent=35 // pred_check_branch
          %212 = sbr.rel (%p210) target = $region40
        $region39: #{tpu_custom_call.1} parent=35 // pred_region
          %213 = dma.done %s206, 1280
        $region40: #{tpu_custom_call.1} parent=35 // pred_fallthru
          _
        %s214 = sand.u32 %s43, 1
        %s215 = scalar_lea.sflag [#allocation3], %s214
        %s216 = sand.u32 %s43, 1
        %s217 = smul.addr %s216, 80
        %s218 = scalar_lea.vmem [#allocation2], %s217
        %p219 = pneg %p56
        %p220 = pneg %p53
        %p221 = pneg %p77
        %p222 = pneg %p74
        %p223 = pneg %p98
        %p224 = pneg %p95
        %p225 = pneg %p119
        %p226 = pneg %p116
        %p227 = pneg %p147
        %p228 = pneg %p144
        %s229 = sand.u32 %s134, 1
        %s230 = scalar_lea.sflag [#allocation4], %s229
        %s231 = sand.u32 %s134, 1
        %s232 = smul.addr %s231, 16
        %s233 = scalar_lea.vmem [#allocation5], %s232
        %s234 = smul.u32 2, %s26
        %s235 = smul.u32 2, %s26
        %v236 = vld [vmem:[%s1] sm:$0xff]
        %v237 = vld [vmem:[%s209] sm:$0xff]
        %v238 = vld [vmem:[%s209 + $0x8] sm:$0xff]
        %v239 = vld [vmem:[%s209 + $0x10] sm:$0xff]
        %v240 = vld [vmem:[%s209 + $0x18] sm:$0xff]
        %v241 = vld [vmem:[%s209 + $0x20] sm:$0xff]
        %v242 = vld [vmem:[%s209 + $0x28] sm:$0xff]
        %v243 = vld [vmem:[%s209 + $0x30] sm:$0xff]
        %v244 = vld [vmem:[%s209 + $0x38] sm:$0xff]
        %v245 = vld [vmem:[%s209 + $0x40] sm:$0xff]
        %v246 = vld [vmem:[%s209 + $0x48] sm:$0xff]
        %vm247 = vcmask 326656
        %v249 = vsel %vm247, %v236, 0
        %251 = vmatprep.subr.mxu0 0.0
        %252 = vmatpush1.msra.mxu0 0.0
        %253 = vmatprep.subr.mxu0 0.0
        %254 = vmatpush1.msra.mxu0 0.0
        %255 = vmatprep.subr.mxu0 0.0
        %256 = vmatpush1.msra.mxu0 0.0
        %257 = vmatprep.subr.mxu0 0.0
        %258 = vmatpush1.msra.mxu0 0.0
        %259 = vmatprep.subr.mxu0 0.0
        %260 = vmatpush1.msra.mxu0 0.0
        %261 = vmatprep.subr.mxu0 0.0
        %262 = vmatpush1.msra.mxu0 0.0
        %263 = vmatprep.subr.mxu0 0.0
        %264 = vmatpush1.msra.mxu0 0.0
        %265 = vmatprep.subr.mxu0 0.0
        %266 = vmatpush1.msra.mxu0 0.0
        %267 = vmatprep.subr.mxu0 0.0
        %268 = vmatpush1.msra.mxu0 0.0
        %269 = vmatprep.subr.mxu0 0.0
        %270 = vmatpush1.msra.mxu0 0.0
        %271 = vmatprep.subr.mxu0 0.0
        %272 = vmatpush1.msra.mxu0 0.0
        %273 = vmatprep.subr.mxu0 %v246
        %274 = vmatpush1.msra.mxu0 %v245
        %275 = vmatprep.subr.mxu0 %v244
        %276 = vmatpush1.msra.mxu0 %v243
        %277 = vmatprep.subr.mxu0 %v242
        %278 = vmatpush1.msra.mxu0 %v241
        %279 = vmatprep.subr.mxu0 %v240
        %280 = vmatpush1.msra.mxu0 %v239
        %281 = vmatprep.subr.mxu0 %v238
        %282 = vmatpush1.msra.mxu0 %v237
        %283 = vmatprep.subr.mxu0 0.0
        %284 = vmatpush2.msra.mxu0 0.0
        %285 = vmatprep.subr.mxu0 0.0
        %286 = vmatpush2.msra.mxu0 0.0
        %287 = vmatprep.subr.mxu0 0.0
        %288 = vmatpush2.msra.mxu0 0.0
        %289 = vmatprep.subr.mxu0 0.0
        %290 = vmatpush2.msra.mxu0 0.0
        %291 = vmatprep.subr.mxu0 0.0
        %292 = vmatpush2.msra.mxu0 0.0
        %293 = vmatprep.subr.mxu0 0.0
        %294 = vmatpush2.msra.mxu0 0.0
        %295 = vmatprep.subr.mxu0 0.0
        %296 = vmatpush2.msra.mxu0 0.0
        %297 = vmatprep.subr.mxu0 0.0
        %298 = vmatpush2.msra.mxu0 0.0
        %299 = vmatprep.subr.mxu0 0.0
        %300 = vmatpush2.msra.mxu0 0.0
        %301 = vmatprep.subr.mxu0 0.0
        %302 = vmatpush2.msra.mxu0 0.0
        %303 = vmatprep.subr.mxu0 0.0
        %304 = vmatpush2.msra.mxu0 0.0
        %305 = vmatprep.subr.mxu0 0.0
        %306 = vmatpush2.msra.mxu0 0.0
        %307 = vmatprep.subr.mxu0 0.0
        %308 = vmatpush2.msra.mxu0 0.0
        %309 = vmatprep.subr.mxu0 0.0
        %310 = vmatpush2.msra.mxu0 0.0
        %311 = vmatprep.subr.mxu0 0.0
        %312 = vmatpush2.msra.mxu0 0.0
        %313 = vmatprep.subr.mxu0 0.0
        %314 = vmatpush2.msra.mxu0 0.0
        %315 = vmatprep.mubr.f32.mxu0 0.0
        %316 = vmatmul.mubr.f32.gmra.mxu0 %v249
        %v317 = vpop.f32.mrf.mxu0
        %v318 = vadd.f32 0.0, %v317
        %v319 = vpop.f32.mrf.mxu0
        %v320 = vadd.f32 0.0, %v319
        %321 = vdwg.mxu0
        %v322 = vld [vmem:[%s2] sm:$0xff]
        %324 = vset.pattern.permute.xlu0 0
        %325 = vperm.xlu0 %324, %v322
        %v326 = vpop.permute.xlu0 %325
        %v328 = vmul.f32 %v318, %v326
        %v329 = vmul.f32 %v320, %v326
        %v330 = vld [vmem:[%s3] sm:$0xff]
        %332 = vset.pattern.permute.xlu0 0
        %333 = vperm.xlu0 %332, %v330
        %v334 = vpop.permute.xlu0 %333
        %v336 = vadd.f32 %v328, %v334
        %v337 = vadd.f32 %v329, %v334
        %v338 = vadd.f32 %v336, 3.0
        %v339 = vadd.f32 %v337, 3.0
        %v340 = vmax.f32 %v338, 0.0
        %v341 = vmax.f32 %v339, 0.0
        %v342 = vmin.f32 %v340, 6.0
        %v343 = vmin.f32 %v341, 6.0
        %v344 = vmul.f32 %v336, %v342
        %v345 = vmul.f32 %v337, %v343
        %v346 = vmul.f32 %v344, 0.16666667
        %v347 = vmul.f32 %v345, 0.16666667
        %348 = vst [vmem:[%s233] sm:$0xff] %v346
        %349 = vst [vmem:[%s233 + $0x8] sm:$0xff] %v347
        %s350 = sand.u32 %s134, 1
        %s351 = scalar_lea.sflag [#allocation4], %s350
        %s352 = sand.u32 %s134, 1
        %s353 = smul.addr %s352, 16
        %s354 = scalar_lea.vmem [#allocation5], %s353
        // Predicated region
        $region41: #{tpu_custom_call.1} parent=35 // pred_check
          %p355 = pneg %p144
        $region42: #{tpu_custom_call.1} parent=35 // pred_check_branch
          %357 = sbr.rel (%p355) target = $region44
        $region43: #{tpu_custom_call.1} parent=35 // pred_region
          %s358 = smul.u32 2, %s26
          %s360 = ssub.s32 256, 256
          %361 = vsyncadd %s351, %s360
          %s362 = smul.addr %s25, 2
          %s363 = sadd.s32 %s358, %s362
          %s364 = smul.addr %s363, 128
          %s365 = scalar_lea.hbm %s4, %s364
          %s367 = sshll.u32 %s354, 4
          %s368 = int_to_ptr.vmem [resolvable:$true] %s367
          %370 = dma.vmem_to_hbm [thread:$0]  %s368, 256, %s365, %s351
        $region44: #{tpu_custom_call.1} parent=35 // pred_fallthru
          _
      $region36: #{tpu_custom_call.1} parent=5 // pred_fallthru
        _
      %p371 = scmp.le.s32.totalorder 2, %s16
      // Predicated region
      $region45: #{tpu_custom_call.1} parent=5 // pred_check
        %p372 = pneg %p371
      $region46: #{tpu_custom_call.1} parent=5 // pred_check_branch
        %374 = sbr.rel (%p372) target = $region48
      $region47: #{tpu_custom_call.1} parent=5 // pred_region
        %s375 = ssub.s32 %s16, 2
        // Predicated region
        $region49: #{tpu_custom_call.1} parent=47 // pred_check
          %p376 = pneg %p150
        $region50: #{tpu_custom_call.1} parent=47 // pred_check_branch
          %378 = sbr.rel (%p376) target = $region52
        $region51: #{tpu_custom_call.1} parent=47 // pred_region
          %s379 = sand.u32 %s135, 1
          %s380 = scalar_lea.sflag [#allocation4], %s379
          %s381 = sand.u32 %s135, 1
          %s382 = smul.addr %s381, 16
          %s383 = scalar_lea.vmem [#allocation5], %s382
          %384 = dma.done %s380, 256
        $region52: #{tpu_custom_call.1} parent=47 // pred_fallthru
          _
      $region48: #{tpu_custom_call.1} parent=5 // pred_fallthru
        _
    $region6: #{tpu_custom_call.1} parent=1 // loop_footer
      %s20 = sadd.s32 1, %s16
    $region7: #{tpu_custom_call.1} parent=1 // loop_footer_branch
      %15 = sbr.rel target = $region3
    $region8: #{tpu_custom_call.1} parent=1 // loop_exit
      _
    %385 = vsyncpa [#allocation3], 1
    %s386 = scalar_lea.sflag [#allocation3], 1
    %387 = vsyncpa %s386, 1
    %388 = vsyncpa [#allocation4], 1
    %s389 = scalar_lea.sflag [#allocation4], 1
    %390 = vsyncpa %s389, 1

</llo_original>
